<compile_context>
chip_gen: v6e
topology: v6e:2x2x1
jax: 0.10.0
libtpu: 0.0.40
codegen_flags: <defaults>
</compile_context>

<pallas_src>
import math
import numpy as np
import jax
import jax.numpy as jnp
from jax.experimental import pallas as pl
from jax.experimental.pallas import tpu as pltpu


# ------------------------------ Pallas kernel ------------------------------

def fused_quantile_kernel(xt_ref, pred_ref, w0_ref, b0_ref, w1_ref, b1_ref,
                          w2_ref, b2_ref, a_ref, out_ref):
    """All d node-MLPs + softplus + folded quantile head in one pass."""
    # Layer 0: xt = [X | t_k columns], weights replicated per node on lanes.
    h = jnp.dot(xt_ref[...], w0_ref[...],
                preferred_element_type=jnp.float32) + b0_ref[...]
    h = jnp.maximum(h, 0.0)                                   # ReLU
    # Layer 1: block-diagonal weight (one dense block per Chebyshev node).
    h = jnp.dot(h, w1_ref[...],
                preferred_element_type=jnp.float32) + b1_ref[...]
    h = jnp.maximum(h, 0.0)                                   # ReLU
    # Layer 2: only output unit 0 of each node -> (bn, d) logits, lane-dense.
    logit = jnp.dot(h, w2_ref[...],
                    preferred_element_type=jnp.float32) + b2_ref[...]
    fo = jax.nn.softplus(logit + 1e-5) + 0.001                # full_output (bn, d)
    # DCT + C_k differencing + C_0 + Chebyshev evaluation, folded into A.
    out_ref[...] = jnp.dot(fo, a_ref[...],
                           preferred_element_type=jnp.float32) + pred_ref[...]


# ------------------------------ constant setup -----------------------------

def dct_matrix(d):
    """torch_dct.dct (DCT-II, norm=None): c = x @ D."""
    m = np.arange(d)[:, None]
    k = np.arange(d)[None, :]
    return (2.0 * np.cos(np.pi * (2 * m + 1) * k / (2 * d))).astype(np.float64)


def diff_matrix(d):
    """C_k = c @ M  (Chebyshev integral coefficients; column 0 stays 0)."""
    M = np.zeros((d, d), np.float64)
    for i in range(1, d - 1):
        M[i - 1, i] = 1.0 / (4 * i)
        M[i + 1, i] = -1.0 / (4 * i)
    M[d - 2, d - 1] = (d - 1) / 4.0          # c_k[:, d-2] / 4 * (d-1)
    return M


def c0_weight(d, mode):
    """C_0 = 2*pred - 2*(C_k @ w)."""
    w = np.zeros((d, 1), np.float64)
    if mode == 'median':
        for idx in range(2, d, 2):
            w[idx, 0] = (-1.0) ** (idx / 2)
    elif mode == 'mean':
        for idx in range(1, d, 2):
            w[idx, 0] = 1.0 / (idx ** 2 - 4)
    else:
        raise ValueError('Point prediction must be mean or median.')
    return w


def cheb_matrix(d, quantiles):
    """T[i, q] = T_i(2*tau_q - 1) for i >= 1 (row 0 is zero: C_k[:,0] unused)."""
    T = np.zeros((d, len(quantiles)), np.float64)
    for q, tau in enumerate(quantiles):
        sigma = 2.0 * tau - 1.0
        t_prev, t_cur = 1.0, sigma
        for i in range(1, d):
            T[i, q] = t_cur
            t_prev, t_cur = t_cur, 2.0 * sigma * t_cur - t_prev
    return T


def build_fused_constants(ws, bs, d, quantiles, mode):
    """Host-side folding of the d-replicated MLP + quantile head constants."""
    w0 = np.asarray(ws[0], np.float64); b0 = np.asarray(bs[0], np.float64)
    w1 = np.asarray(ws[1], np.float64); b1 = np.asarray(bs[1], np.float64)
    w2 = np.asarray(ws[2], np.float64); b2 = np.asarray(bs[2], np.float64)
    window = w0.shape[0] - 1
    H0, H1 = w0.shape[1], w1.shape[1]
    Q = len(quantiles)

    # Layer 0, wide: input is [X | t_0..t_{d-1}]; node i uses its own t column.
    W0_big = np.zeros((window + d, d * H0), np.float64)
    for i in range(d):
        W0_big[:window, i * H0:(i + 1) * H0] = w0[1:, :]     # shared X part
        W0_big[window + i, i * H0:(i + 1) * H0] = w0[0, :]   # t column, node i
    b0_rep = np.tile(b0, (1, d))

    # Layer 1, block-diagonal: nodes stay independent.
    W1_bd = np.zeros((d * H0, d * H1), np.float64)
    for i in range(d):
        W1_bd[i * H0:(i + 1) * H0, i * H1:(i + 1) * H1] = w1
    b1_rep = np.tile(b1, (1, d))

    # Layer 2: only output unit 0 of each node is ever used by the module.
    W2_col = np.zeros((d * H1, d), np.float64)
    for i in range(d):
        W2_col[i * H1:(i + 1) * H1, i] = w2[:, 0]
    b2_row = np.full((1, d), b2[0, 0], np.float64)

    # Fold DCT, differencing, C_0 and the Chebyshev series into one matrix:
    #   ck@T + 0.5*(2*pred - 2*ck@W0w) = ck @ (T - W0w@1) + pred
    #   => out = fo @ (D @ M @ (T - W0w@1)) + pred  =  fo @ A + pred
    A = dct_matrix(d) @ diff_matrix(d) @ (
        cheb_matrix(d, quantiles) - c0_weight(d, mode) @ np.ones((1, Q)))

    f32 = lambda a: jnp.asarray(a, jnp.float32)
    return (f32(W0_big), f32(b0_rep), f32(W1_bd), f32(b1_rep),
            f32(W2_col), f32(b2_row), f32(A))


def make_mlp_params(key, input_dim, layer_dims):
    """Deterministic PyTorch-Linear-style init (uniform +-1/sqrt(fan_in))."""
    ws, bs = [], []
    dims = [input_dim] + list(layer_dims)
    for i in range(len(layer_dims)):
        key, kw, kb = jax.random.split(key, 3)
        bound = 1.0 / math.sqrt(dims[i])
        ws.append(jax.random.uniform(kw, (dims[i], dims[i + 1]), jnp.float32, -bound, bound))
        bs.append(jax.random.uniform(kb, (1, dims[i + 1]), jnp.float32, -bound, bound))
    return ws, bs


# ------------------------------ forward wrapper -----------------------------

def quantile_network_forward(X, pred, ws, bs, d, quantiles, mode='median',
                             max_block_n=1024):
    X = jnp.asarray(X, jnp.float32)
    pred = jnp.asarray(pred, jnp.float32).reshape(-1, 1)
    N, window = X.shape
    Q = len(quantiles)

    (W0_big, b0_rep, W1_bd, b1_rep,
     W2_col, b2_row, A) = build_fused_constants(ws, bs, d, quantiles, mode)

    # t_k column for node i, sample n:  t_k[(i + n) % d]
    t_k = (0.5 * np.cos(np.pi * (np.arange(d) + 0.5) / d) + 0.5).astype(np.float32)

    # Row tiling: multiple-of-8 block, pad N so the (parallel) grid divides.
    bn = min(max_block_n, N)
    bn = -(-bn // 8) * 8
    Np = -(-N // bn) * bn

    idx = (np.arange(Np)[:, None] + np.arange(d)[None, :]) % d      # (Np, d)
    t_nd = jnp.asarray(t_k[idx])
    Xp = jnp.pad(X, ((0, Np - N), (0, 0)))
    predp = jnp.pad(pred, ((0, Np - N), (0, 0)))
    xt = jnp.concatenate([Xp, t_nd], axis=1)                        # (Np, window+d)

    out = pl.pallas_call(
        fused_quantile_kernel,
        out_shape=jax.ShapeDtypeStruct((Np, Q), jnp.float32),
        grid=(Np // bn,),
        in_specs=[
            pl.BlockSpec((bn, window + d), lambda i: (i, 0)),       # rows vary
            pl.BlockSpec((bn, 1), lambda i: (i, 0)),                # pred
            pl.BlockSpec(W0_big.shape, lambda i: (0, 0)),           # constants:
            pl.BlockSpec(b0_rep.shape, lambda i: (0, 0)),           # block index
            pl.BlockSpec(W1_bd.shape, lambda i: (0, 0)),            # never changes
            pl.BlockSpec(b1_rep.shape, lambda i: (0, 0)),           # -> fetched once
            pl.BlockSpec(W2_col.shape, lambda i: (0, 0)),
            pl.BlockSpec(b2_row.shape, lambda i: (0, 0)),
            pl.BlockSpec(A.shape, lambda i: (0, 0)),
        ],
        out_specs=pl.BlockSpec((bn, Q), lambda i: (i, 0)),
        compiler_params=pltpu.CompilerParams(
            dimension_semantics=("parallel",)),
    )(xt, predp, W0_big, b0_rep, W1_bd, b1_rep, W2_col, b2_row, A)
    return out[:N]


# ------------------------------ numpy reference -----------------------------

def reference_forward(X, pred, ws, bs, d, quantiles, mode='median'):
    Xn = np.asarray(X, np.float64)
    predn = np.asarray(pred, np.float64)
    N = Xn.shape[0]
    t_k = 0.5 * np.cos(np.pi * (np.arange(d) + 0.5) / d) + 0.5
    full_output = np.zeros((N, d))
    for i in range(d):
        t_col = t_k[(i + np.arange(N)) % d][:, None]
        h = np.concatenate([t_col, Xn], axis=1)
        for li in range(len(ws)):
            h = h @ np.asarray(ws[li], np.float64) + np.asarray(bs[li], np.float64)
            if li < len(ws) - 1:
                h = np.maximum(h, 0.0)
        full_output[:, i] = np.log1p(np.exp(h[:, 0] + 1e-5)) + 0.001
    c = full_output @ dct_matrix(d)
    Ck = np.zeros((N, d))
    for i in range(1, d - 1):
        Ck[:, i] = (c[:, i - 1] - c[:, i + 1]) / (4 * i)
    Ck[:, d - 1] = c[:, d - 2] / 4 * (d - 1)
    if mode == 'median':
        idxs = np.arange(2, d, 2)
        C0 = 2 * predn - 2 * np.sum(Ck[:, idxs] * ((-1.0) ** (idxs / 2))[None, :], axis=1)
    else:
        idxs = np.arange(1, d, 2)
        C0 = 2 * predn - 2 * np.sum(Ck[:, idxs] / (idxs ** 2 - 4)[None, :], axis=1)
    out = np.zeros((N, len(quantiles)))
    for qi, tau in enumerate(quantiles):
        sigma = 2 * tau - 1
        T1 = np.zeros(N); T2 = np.zeros(N)
        for i in range(d - 1, 0, -1):
            T3 = T1
            T1 = 2 * sigma * T1 - T2 + Ck[:, i]
            T2 = T3
        out[:, qi] = sigma * T1 - T2 + 0.5 * C0
    return out


# ----------------------------------- main -----------------------------------

if __name__ == "__main__":
    # params (small, consistent with the module): window=7 -> input_dim=8,
    # num_layers=3, layer_dims=[32, 32, 8], d=8, type='median'
    N, window, d = 16, 7, 8
    layer_dims = [32, 32, 8]
    quantiles = [0.1, 0.5, 0.9]

    key = jax.random.PRNGKey(0)
    kx, kp, kw = jax.random.split(key, 3)
    X = jax.random.normal(kx, (N, window), jnp.float32)
    pred = jax.random.normal(kp, (N,), jnp.float32)
    ws, bs = make_mlp_params(kw, window + 1, layer_dims)

    out = quantile_network_forward(X, pred, ws, bs, d, quantiles, mode='median')
    out = jax.block_until_ready(out)

    ref = reference_forward(X, pred, ws, bs, d, quantiles, mode='median')
    if not np.allclose(np.asarray(out), ref, rtol=1e-3, atol=1e-3):
        raise AssertionError("Pallas result does not match reference")

    print("KERNEL_OK")
</pallas_src>

<mosaic_0001>
module attributes {stable_mosaic.version = 11 : i64} {
  func.func @fused_quantile_kernel(%arg0: i32, %arg1: memref<16x15xf32, #tpu.memory_space<vmem>>, %arg2: memref<16x1xf32, #tpu.memory_space<vmem>>, %arg3: memref<15x256xf32, #tpu.memory_space<vmem>>, %arg4: memref<1x256xf32, #tpu.memory_space<vmem>>, %arg5: memref<256x256xf32, #tpu.memory_space<vmem>>, %arg6: memref<1x256xf32, #tpu.memory_space<vmem>>, %arg7: memref<256x8xf32, #tpu.memory_space<vmem>>, %arg8: memref<1x8xf32, #tpu.memory_space<vmem>>, %arg9: memref<8x3xf32, #tpu.memory_space<vmem>>, %arg10: memref<16x3xf32, #tpu.memory_space<vmem>>) attributes {dimension_semantics = [#tpu.dimension_semantics<parallel>], iteration_bounds = array<i64: 1>, scalar_prefetch = 0 : i64, scratch_operands = 0 : i64, tpu.core_type = #tpu.core_type<tc>, window_params = [{transform_indices = @transform_0, window_bounds = array<i64: 16, 15>}, {transform_indices = @transform_1, window_bounds = array<i64: 16, 1>}, {pipeline_mode = #tpu.pipeline_mode<synchronous>, transform_indices = @transform_2, window_bounds = array<i64: 15, 256>}, {pipeline_mode = #tpu.pipeline_mode<synchronous>, transform_indices = @transform_3, window_bounds = array<i64: 1, 256>}, {pipeline_mode = #tpu.pipeline_mode<synchronous>, transform_indices = @transform_4, window_bounds = array<i64: 256, 256>}, {pipeline_mode = #tpu.pipeline_mode<synchronous>, transform_indices = @transform_5, window_bounds = array<i64: 1, 256>}, {pipeline_mode = #tpu.pipeline_mode<synchronous>, transform_indices = @transform_6, window_bounds = array<i64: 256, 8>}, {pipeline_mode = #tpu.pipeline_mode<synchronous>, transform_indices = @transform_7, window_bounds = array<i64: 1, 8>}, {pipeline_mode = #tpu.pipeline_mode<synchronous>, transform_indices = @transform_8, window_bounds = array<i64: 8, 3>}, {transform_indices = @transform_9, window_bounds = array<i64: 16, 3>}]} {
    %c0 = arith.constant 0 : index
    %c0_0 = arith.constant 0 : index
    %0 = vector.load %arg1[%c0, %c0_0] : memref<16x15xf32, #tpu.memory_space<vmem>>, vector<16x15xf32>
    %c0_1 = arith.constant 0 : index
    %c0_2 = arith.constant 0 : index
    %1 = vector.load %arg3[%c0_1, %c0_2] : memref<15x256xf32, #tpu.memory_space<vmem>>, vector<15x256xf32>
    %cst = arith.constant dense<0.000000e+00> : vector<16x256xf32>
    %2 = tpu.matmul %0, %1, %cst {dimension_numbers = #tpu.dot_dimension_numbers<[1], [0], [0], [1], [0, 0, 1, 1], [], []>} : vector<16x15xf32>, vector<15x256xf32>, vector<16x256xf32> -> vector<16x256xf32>
    %c0_3 = arith.constant 0 : index
    %c0_4 = arith.constant 0 : index
    %3 = vector.load %arg4[%c0_3, %c0_4] : memref<1x256xf32, #tpu.memory_space<vmem>>, vector<1x256xf32>
    %4 = vector.broadcast %3 : vector<1x256xf32> to vector<16x256xf32>
    %5 = arith.addf %2, %4 : vector<16x256xf32>
    %cst_5 = arith.constant 0.000000e+00 : f32
    %6 = vector.broadcast %cst_5 : f32 to vector<16x256xf32>
    %7 = arith.maximumf %5, %6 : vector<16x256xf32>
    %c0_6 = arith.constant 0 : index
    %c0_7 = arith.constant 0 : index
    %8 = vector.load %arg5[%c0_6, %c0_7] : memref<256x256xf32, #tpu.memory_space<vmem>>, vector<256x256xf32>
    %cst_8 = arith.constant dense<0.000000e+00> : vector<16x256xf32>
    %9 = tpu.matmul %7, %8, %cst_8 {dimension_numbers = #tpu.dot_dimension_numbers<[1], [0], [0], [1], [0, 0, 1, 1], [], []>} : vector<16x256xf32>, vector<256x256xf32>, vector<16x256xf32> -> vector<16x256xf32>
    %c0_9 = arith.constant 0 : index
    %c0_10 = arith.constant 0 : index
    %10 = vector.load %arg6[%c0_9, %c0_10] : memref<1x256xf32, #tpu.memory_space<vmem>>, vector<1x256xf32>
    %11 = vector.broadcast %10 : vector<1x256xf32> to vector<16x256xf32>
    %12 = arith.addf %9, %11 : vector<16x256xf32>
    %cst_11 = arith.constant 0.000000e+00 : f32
    %13 = vector.broadcast %cst_11 : f32 to vector<16x256xf32>
    %14 = arith.maximumf %12, %13 : vector<16x256xf32>
    %c0_12 = arith.constant 0 : index
    %c0_13 = arith.constant 0 : index
    %15 = vector.load %arg7[%c0_12, %c0_13] : memref<256x8xf32, #tpu.memory_space<vmem>>, vector<256x8xf32>
    %cst_14 = arith.constant dense<0.000000e+00> : vector<16x8xf32>
    %16 = tpu.matmul %14, %15, %cst_14 {dimension_numbers = #tpu.dot_dimension_numbers<[1], [0], [0], [1], [0, 0, 1, 1], [], []>} : vector<16x256xf32>, vector<256x8xf32>, vector<16x8xf32> -> vector<16x8xf32>
    %c0_15 = arith.constant 0 : index
    %c0_16 = arith.constant 0 : index
    %17 = vector.load %arg8[%c0_15, %c0_16] : memref<1x8xf32, #tpu.memory_space<vmem>>, vector<1x8xf32>
    %18 = vector.broadcast %17 : vector<1x8xf32> to vector<16x8xf32>
    %19 = arith.addf %16, %18 : vector<16x8xf32>
    %cst_17 = arith.constant 9.99999974E-6 : f32
    %20 = vector.broadcast %cst_17 : f32 to vector<16x8xf32>
    %21 = arith.addf %19, %20 : vector<16x8xf32>
    %cst_18 = arith.constant 0.000000e+00 : f32
    %22 = vector.broadcast %cst_18 : f32 to vector<16x8xf32>
    %23 = arith.maximumf %21, %22 : vector<16x8xf32>
    %24 = vector.broadcast %cst_18 : f32 to vector<16x8xf32>
    %25 = arith.subf %21, %24 : vector<16x8xf32>
    %26 = arith.cmpf one, %25, %25 : vector<16x8xf32>
    %27 = vector.broadcast %cst_18 : f32 to vector<16x8xf32>
    %28 = arith.addf %21, %27 : vector<16x8xf32>
    %29 = math.absf %25 : vector<16x8xf32>
    %cst_19 = arith.constant 0.000000e+00 : f32
    %30 = vector.broadcast %cst_19 : f32 to vector<16x8xf32>
    %31 = arith.subf %30, %29 : vector<16x8xf32>
    %32 = math.exp %31 : vector<16x8xf32>
    %33 = math.log1p %32 : vector<16x8xf32>
    %34 = arith.addf %23, %33 : vector<16x8xf32>
    %35 = arith.select %26, %28, %34 : vector<16x8xi1>, vector<16x8xf32>
    %cst_20 = arith.constant 1.000000e-03 : f32
    %36 = vector.broadcast %cst_20 : f32 to vector<16x8xf32>
    %37 = arith.addf %35, %36 : vector<16x8xf32>
    %c0_21 = arith.constant 0 : index
    %c0_22 = arith.constant 0 : index
    %38 = vector.load %arg9[%c0_21, %c0_22] : memref<8x3xf32, #tpu.memory_space<vmem>>, vector<8x3xf32>
    %cst_23 = arith.constant dense<0.000000e+00> : vector<16x3xf32>
    %39 = tpu.matmul %37, %38, %cst_23 {dimension_numbers = #tpu.dot_dimension_numbers<[1], [0], [0], [1], [0, 0, 1, 1], [], []>} : vector<16x8xf32>, vector<8x3xf32>, vector<16x3xf32> -> vector<16x3xf32>
    %c0_24 = arith.constant 0 : index
    %c0_25 = arith.constant 0 : index
    %40 = vector.load %arg2[%c0_24, %c0_25] : memref<16x1xf32, #tpu.memory_space<vmem>>, vector<16x1xf32>
    %41 = vector.broadcast %40 : vector<16x1xf32> to vector<16x3xf32>
    %42 = arith.addf %39, %41 : vector<16x3xf32>
    %c0_26 = arith.constant 0 : index
    %c0_27 = arith.constant 0 : index
    %43 = vector.load %arg10[%c0_26, %c0_27] : memref<16x3xf32, #tpu.memory_space<vmem>>, vector<16x3xf32>
    tpu.vector_store %arg10[%c0_26, %c0_27], %42 {strides = array<i32>} : memref<16x3xf32, #tpu.memory_space<vmem>>, vector<16x3xf32>,
    return
  }
  func.func @transform_0(%arg0: i32) -> (i32, i32) {
    %c0_i32 = arith.constant 0 : i32
    %c0_i32_0 = arith.constant 0 : i32
    return %arg0, %c0_i32 : i32, i32
  }
  func.func @transform_1(%arg0: i32) -> (i32, i32) {
    %c0_i32 = arith.constant 0 : i32
    %c0_i32_0 = arith.constant 0 : i32
    return %arg0, %c0_i32 : i32, i32
  }
  func.func @transform_2(%arg0: i32) -> (i32, i32) {
    %c0_i32 = arith.constant 0 : i32
    %c0_i32_0 = arith.constant 0 : i32
    %c0_i32_1 = arith.constant 0 : i32
    return %c0_i32, %c0_i32_0 : i32, i32
  }
  func.func @transform_3(%arg0: i32) -> (i32, i32) {
    %c0_i32 = arith.constant 0 : i32
    %c0_i32_0 = arith.constant 0 : i32
    %c0_i32_1 = arith.constant 0 : i32
    return %c0_i32, %c0_i32_0 : i32, i32
  }
  func.func @transform_4(%arg0: i32) -> (i32, i32) {
    %c0_i32 = arith.constant 0 : i32
    %c0_i32_0 = arith.constant 0 : i32
    %c0_i32_1 = arith.constant 0 : i32
    return %c0_i32, %c0_i32_0 : i32, i32
  }
  func.func @transform_5(%arg0: i32) -> (i32, i32) {
    %c0_i32 = arith.constant 0 : i32
    %c0_i32_0 = arith.constant 0 : i32
    %c0_i32_1 = arith.constant 0 : i32
    return %c0_i32, %c0_i32_0 : i32, i32
  }
  func.func @transform_6(%arg0: i32) -> (i32, i32) {
    %c0_i32 = arith.constant 0 : i32
    %c0_i32_0 = arith.constant 0 : i32
    %c0_i32_1 = arith.constant 0 : i32
    return %c0_i32, %c0_i32_0 : i32, i32
  }
  func.func @transform_7(%arg0: i32) -> (i32, i32) {
    %c0_i32 = arith.constant 0 : i32
    %c0_i32_0 = arith.constant 0 : i32
    %c0_i32_1 = arith.constant 0 : i32
    return %c0_i32, %c0_i32_0 : i32, i32
  }
  func.func @transform_8(%arg0: i32) -> (i32, i32) {
    %c0_i32 = arith.constant 0 : i32
    %c0_i32_0 = arith.constant 0 : i32
    %c0_i32_1 = arith.constant 0 : i32
    return %c0_i32, %c0_i32_0 : i32, i32
  }
  func.func @transform_9(%arg0: i32) -> (i32, i32) {
    %c0_i32 = arith.constant 0 : i32
    %c0_i32_0 = arith.constant 0 : i32
    return %arg0, %c0_i32 : i32, i32
  }
}

</mosaic_0001>

<llo_original>
// kernel: tpu_custom_call.1
$region0: #{tpu_custom_call.1}
  #allocation0 [shape = 'u32[]', space=smem, size = 0x4, offset = 0x4, fixed_abs, tag = 'smem constant byte address 0x4 - core index']
  #allocation1 [shape = 'u32[144,128]{1,0:T(1,128)}', space=vmem, size = 0x12000, scoped, tag = 'internal scratch']
  %s0 = inlined_call_operand.vmem [shape: f32[16,15], index: 0, kind: input, shape index: {}]
  %s1 = inlined_call_operand.vmem [shape: f32[16,1], index: 1, kind: input, shape index: {}]
  %s2 = inlined_call_operand.vmem [shape: f32[15,256], index: 2, kind: input, shape index: {}]
  %s3 = inlined_call_operand.vmem [shape: f32[1,256], index: 3, kind: input, shape index: {}]
  %s4 = inlined_call_operand.hbm [shape: f32[256,256], index: 4, kind: input, shape index: {}]
  %s5 = inlined_call_operand.vmem [shape: f32[1,256], index: 5, kind: input, shape index: {}]
  %s6 = inlined_call_operand.vmem [shape: f32[256,8], index: 6, kind: input, shape index: {}]
  %s7 = inlined_call_operand.vmem [shape: f32[1,8], index: 7, kind: input, shape index: {}]
  %s8 = inlined_call_operand.vmem [shape: f32[8,3], index: 8, kind: input, shape index: {}]
  %s9 = inlined_call_operand.vmem [shape: f32[16,3], index: 9, kind: output, shape index: {}]
  %s10 = sld [smem:[#allocation0]]
  $region50: #{tpu_custom_call.1} parent=0
    _
  %s12 = ssub.s32 1, %s10
  %s13 = scalar_select 0, %s12, %s10
  $region1: #{tpu_custom_call.1} parent=0
    #allocation2 [shape = 'u8[262144]{0}', space=vmem, size = 0x40000, scoped, tag = 'input window, operand 4, single buffered']
    #allocation3 [shape = 's32[1]{0}', space=sflag, size = 0x4, scoped, tag = 'scoped memory for tpu_custom_call.1']
    %14 = vsyncpa [#allocation3], 0
    // Predicated region
    $region2: #{tpu_custom_call.1} parent=1 // pred_check
      _
    $region3: #{tpu_custom_call.1} parent=1 // pred_check_branch
      %16 = sbr.rel (0) target = $region5
    $region4: #{tpu_custom_call.1} parent=1 // pred_region
      _
    $region5: #{tpu_custom_call.1} parent=1 // pred_fallthru
      _
    // Predicated region
    $region6: #{tpu_custom_call.1} parent=1 // pred_check
      _
    $region7: #{tpu_custom_call.1} parent=1 // pred_check_branch
      %18 = sbr.rel (0) target = $region9
    $region8: #{tpu_custom_call.1} parent=1 // pred_region
      _
    $region9: #{tpu_custom_call.1} parent=1 // pred_fallthru
      _
    // Predicated region
    $region10: #{tpu_custom_call.1} parent=1 // pred_check
      _
    $region11: #{tpu_custom_call.1} parent=1 // pred_check_branch
      %20 = sbr.rel (0) target = $region13
    $region12: #{tpu_custom_call.1} parent=1 // pred_region
      _
    $region13: #{tpu_custom_call.1} parent=1 // pred_fallthru
      _
    // Predicated region
    $region14: #{tpu_custom_call.1} parent=1 // pred_check
      _
    $region15: #{tpu_custom_call.1} parent=1 // pred_check_branch
      %22 = sbr.rel (0) target = $region17
    $region16: #{tpu_custom_call.1} parent=1 // pred_region
      _
    $region17: #{tpu_custom_call.1} parent=1 // pred_fallthru
      _
    // Predicated region
    $region18: #{tpu_custom_call.1} parent=1 // pred_check
      _
    $region19: #{tpu_custom_call.1} parent=1 // pred_check_branch
      %24 = sbr.rel (0) target = $region21
    $region20: #{tpu_custom_call.1} parent=1 // pred_region
      %s26 = ssub.s32 8192, 8192
      %27 = vsyncadd [#allocation3], %s26
      %s28 = sshll.u32 [#allocation2], 4
      %s29 = int_to_ptr.vmem [resolvable:$true] %s28
      %34 = dma.hbm_to_vmem [thread:$0]  %s4, 8192, %s29, [#allocation3], 256, 256, 16
    $region21: #{tpu_custom_call.1} parent=1 // pred_fallthru
      _
    // Predicated region
    $region22: #{tpu_custom_call.1} parent=1 // pred_check
      _
    $region23: #{tpu_custom_call.1} parent=1 // pred_check_branch
      %36 = sbr.rel (0) target = $region25
    $region24: #{tpu_custom_call.1} parent=1 // pred_region
      _
    $region25: #{tpu_custom_call.1} parent=1 // pred_fallthru
      _
    // Predicated region
    $region26: #{tpu_custom_call.1} parent=1 // pred_check
      _
    $region27: #{tpu_custom_call.1} parent=1 // pred_check_branch
      %38 = sbr.rel (0) target = $region29
    $region28: #{tpu_custom_call.1} parent=1 // pred_region
      _
    $region29: #{tpu_custom_call.1} parent=1 // pred_fallthru
      _
    // Predicated region
    $region30: #{tpu_custom_call.1} parent=1 // pred_check
      _
    $region31: #{tpu_custom_call.1} parent=1 // pred_check_branch
      %40 = sbr.rel (0) target = $region33
    $region32: #{tpu_custom_call.1} parent=1 // pred_region
      _
    $region33: #{tpu_custom_call.1} parent=1 // pred_fallthru
      _
    // Predicated region
    $region34: #{tpu_custom_call.1} parent=1 // pred_check
      _
    $region35: #{tpu_custom_call.1} parent=1 // pred_check_branch
      %42 = sbr.rel (0) target = $region37
    $region36: #{tpu_custom_call.1} parent=1 // pred_region
      _
    $region37: #{tpu_custom_call.1} parent=1 // pred_fallthru
      _
    // Predicated region
    $region38: #{tpu_custom_call.1} parent=1 // pred_check
      _
    $region39: #{tpu_custom_call.1} parent=1 // pred_check_branch
      %44 = sbr.rel (0) target = $region41
    $region40: #{tpu_custom_call.1} parent=1 // pred_region
      %45 = dma.done [#allocation3], 8192
    $region41: #{tpu_custom_call.1} parent=1 // pred_fallthru
      _
    %v46 = vld [vmem:[%s0] sm:$0xff]
    %v47 = vld [vmem:[%s0 + $0x8] sm:$0xff]
    %v48 = vld [vmem:[%s2] sm:$0xff]
    %v49 = vld [vmem:[%s2 + $0x8] sm:$0xff]
    %v50 = vld [vmem:[%s2 + $0x10] sm:$0x7f]
    %v51 = vld [vmem:[%s2 + $0x18] sm:$0x7f]
    %v52 = vld [vmem:[%s3] sm:$0x3]
    %v54 = vlaneseq
    %v55 = vshrl.u32 %v54, 7
    %v56 = vsub.s32 0, %v55
    %v57 = vrot.slane %v52, %v56
    %v58 = vlaneseq
    %v59 = vshrl.u32 %v58, 7
    %v60 = vsub.s32 1, %v59
    %v61 = vrot.slane %v52, %v60
    %vm64 = vcmask 121856
    %v66 = vsel %vm64, %v46, 0
    %v69 = vsel %vm64, %v47, 0
    %vm71 = vcmask 1046528
    %v73 = vsel %vm71, %v50, 0
    %v76 = vsel %vm71, %v51, 0
    %78 = vmatprep.subr.mxu0 0.0
    %79 = vmatpush1.msra.mxu0 0.0
    %80 = vmatprep.subr.mxu0 0.0
    %81 = vmatpush1.msra.mxu0 0.0
    %82 = vmatprep.subr.mxu0 0.0
    %83 = vmatpush1.msra.mxu0 0.0
    %84 = vmatprep.subr.mxu0 0.0
    %85 = vmatpush1.msra.mxu0 0.0
    %86 = vmatprep.subr.mxu0 0.0
    %87 = vmatpush1.msra.mxu0 0.0
    %88 = vmatprep.subr.mxu0 0.0
    %89 = vmatpush1.msra.mxu0 0.0
    %90 = vmatprep.subr.mxu0 0.0
    %91 = vmatpush1.msra.mxu0 0.0
    %92 = vmatprep.subr.mxu0 0.0
    %93 = vmatpush1.msra.mxu0 0.0
    %94 = vmatprep.subr.mxu0 0.0
    %95 = vmatpush1.msra.mxu0 0.0
    %96 = vmatprep.subr.mxu0 0.0
    %97 = vmatpush1.msra.mxu0 0.0
    %98 = vmatprep.subr.mxu0 0.0
    %99 = vmatpush1.msra.mxu0 0.0
    %100 = vmatprep.subr.mxu0 0.0
    %101 = vmatpush1.msra.mxu0 0.0
    %102 = vmatprep.subr.mxu0 0.0
    %103 = vmatpush1.msra.mxu0 0.0
    %104 = vmatprep.subr.mxu0 0.0
    %105 = vmatpush1.msra.mxu0 0.0
    %106 = vmatprep.subr.mxu0 %v76
    %107 = vmatpush1.msra.mxu0 %v73
    %108 = vmatprep.subr.mxu0 %v49
    %109 = vmatpush1.msra.mxu0 %v48
    %110 = vmatprep.subr.mxu0 0.0
    %111 = vmatpush2.msra.mxu0 0.0
    %112 = vmatprep.subr.mxu0 0.0
    %113 = vmatpush2.msra.mxu0 0.0
    %114 = vmatprep.subr.mxu0 0.0
    %115 = vmatpush2.msra.mxu0 0.0
    %116 = vmatprep.subr.mxu0 0.0
    %117 = vmatpush2.msra.mxu0 0.0
    %118 = vmatprep.subr.mxu0 0.0
    %119 = vmatpush2.msra.mxu0 0.0
    %120 = vmatprep.subr.mxu0 0.0
    %121 = vmatpush2.msra.mxu0 0.0
    %122 = vmatprep.subr.mxu0 0.0
    %123 = vmatpush2.msra.mxu0 0.0
    %124 = vmatprep.subr.mxu0 0.0
    %125 = vmatpush2.msra.mxu0 0.0
    %126 = vmatprep.subr.mxu0 0.0
    %127 = vmatpush2.msra.mxu0 0.0
    %128 = vmatprep.subr.mxu0 0.0
    %129 = vmatpush2.msra.mxu0 0.0
    %130 = vmatprep.subr.mxu0 0.0
    %131 = vmatpush2.msra.mxu0 0.0
    %132 = vmatprep.subr.mxu0 0.0
    %133 = vmatpush2.msra.mxu0 0.0
    %134 = vmatprep.subr.mxu0 0.0
    %135 = vmatpush2.msra.mxu0 0.0
    %136 = vmatprep.subr.mxu0 0.0
    %137 = vmatpush2.msra.mxu0 0.0
    %138 = vmatprep.subr.mxu0 0.0
    %139 = vmatpush2.msra.mxu0 0.0
    %140 = vmatprep.subr.mxu0 0.0
    %141 = vmatpush2.msra.mxu0 0.0
    %142 = vmatprep.mubr.f32.mxu0 0.0
    %143 = vmatmul.mubr.f32.gmra.mxu0 %v66
    %v144 = vpop.f32.mrf.mxu0
    %v145 = vadd.f32 %v57, %v144
    %v146 = vpop.f32.mrf.mxu0
    %v147 = vadd.f32 %v61, %v146
    %148 = vmatprep.mubr.f32.mxu0 0.0
    %149 = vmatmul.mubr.f32.gmra.mxu0 %v69
    %v150 = vpop.f32.mrf.mxu0
    %v151 = vadd.f32 %v57, %v150
    %v152 = vpop.f32.mrf.mxu0
    %v153 = vadd.f32 %v61, %v152
    %154 = vdwg.mxu0
    %v155 = vmax.f32 %v145, 0.0
    %v156 = vmax.f32 %v147, 0.0
    %v157 = vmax.f32 %v151, 0.0
    %v158 = vmax.f32 %v153, 0.0
    %v159 = vld [vmem:[#allocation2] sm:$0xff]
    %v160 = vld [vmem:[#allocation2 + $0x8] sm:$0xff]
    %v161 = vld [vmem:[#allocation2 + $0x10] sm:$0xff]
    %v162 = vld [vmem:[#allocation2 + $0x18] sm:$0xff]
    %v163 = vld [vmem:[#allocation2 + $0x20] sm:$0xff]
    %v164 = vld [vmem:[#allocation2 + $0x28] sm:$0xff]
    %v165 = vld [vmem:[#allocation2 + $0x30] sm:$0xff]
    %v166 = vld [vmem:[#allocation2 + $0x38] sm:$0xff]
    %v167 = vld [vmem:[#allocation2 + $0x40] sm:$0xff]
    %v168 = vld [vmem:[#allocation2 + $0x48] sm:$0xff]
    %v169 = vld [vmem:[#allocation2 + $0x50] sm:$0xff]
    %v170 = vld [vmem:[#allocation2 + $0x58] sm:$0xff]
    %v171 = vld [vmem:[#allocation2 + $0x60] sm:$0xff]
    %v172 = vld [vmem:[#allocation2 + $0x68] sm:$0xff]
    %v173 = vld [vmem:[#allocation2 + $0x70] sm:$0xff]
    %v174 = vld [vmem:[#allocation2 + $0x78] sm:$0xff]
    %v175 = vld [vmem:[#allocation2 + $0x80] sm:$0xff]
    %v176 = vld [vmem:[#allocation2 + $0x88] sm:$0xff]
    %v177 = vld [vmem:[#allocation2 + $0x90] sm:$0xff]
    %v178 = vld [vmem:[#allocation2 + $0x98] sm:$0xff]
    %v179 = vld [vmem:[#allocation2 + $0xa0] sm:$0xff]
    %v180 = vld [vmem:[#allocation2 + $0xa8] sm:$0xff]
    %v181 = vld [vmem:[#allocation2 + $0xb0] sm:$0xff]
    %v182 = vld [vmem:[#allocation2 + $0xb8] sm:$0xff]
    %v183 = vld [vmem:[#allocation2 + $0xc0] sm:$0xff]
    %v184 = vld [vmem:[#allocation2 + $0xc8] sm:$0xff]
    %v185 = vld [vmem:[#allocation2 + $0xd0] sm:$0xff]
    %v186 = vld [vmem:[#allocation2 + $0xd8] sm:$0xff]
    %v187 = vld [vmem:[#allocation2 + $0xe0] sm:$0xff]
    %v188 = vld [vmem:[#allocation2 + $0xe8] sm:$0xff]
    %v189 = vld [vmem:[#allocation2 + $0xf0] sm:$0xff]
    %v190 = vld [vmem:[#allocation2 + $0xf8] sm:$0xff]
    %v191 = vld [vmem:[#allocation2 + $0x100] sm:$0xff]
    %v192 = vld [vmem:[#allocation2 + $0x108] sm:$0xff]
    %v193 = vld [vmem:[#allocation2 + $0x110] sm:$0xff]
    %v194 = vld [vmem:[#allocation2 + $0x118] sm:$0xff]
    %v195 = vld [vmem:[#allocation2 + $0x120] sm:$0xff]
    %v196 = vld [vmem:[#allocation2 + $0x128] sm:$0xff]
    %v197 = vld [vmem:[#allocation2 + $0x130] sm:$0xff]
    %v198 = vld [vmem:[#allocation2 + $0x138] sm:$0xff]
    %v199 = vld [vmem:[#allocation2 + $0x140] sm:$0xff]
    %v200 = vld [vmem:[#allocation2 + $0x148] sm:$0xff]
    %v201 = vld [vmem:[#allocation2 + $0x150] sm:$0xff]
    %v202 = vld [vmem:[#allocation2 + $0x158] sm:$0xff]
    %v203 = vld [vmem:[#allocation2 + $0x160] sm:$0xff]
    %v204 = vld [vmem:[#allocation2 + $0x168] sm:$0xff]
    %v205 = vld [vmem:[#allocation2 + $0x170] sm:$0xff]
    %v206 = vld [vmem:[#allocation2 + $0x178] sm:$0xff]
    %v207 = vld [vmem:[#allocation2 + $0x180] sm:$0xff]
    %v208 = vld [vmem:[#allocation2 + $0x188] sm:$0xff]
    %v209 = vld [vmem:[#allocation2 + $0x190] sm:$0xff]
    %v210 = vld [vmem:[#allocation2 + $0x198] sm:$0xff]
    %v211 = vld [vmem:[#allocation2 + $0x1a0] sm:$0xff]
    %v212 = vld [vmem:[#allocation2 + $0x1a8] sm:$0xff]
    %v213 = vld [vmem:[#allocation2 + $0x1b0] sm:$0xff]
    %v214 = vld [vmem:[#allocation2 + $0x1b8] sm:$0xff]
    %v215 = vld [vmem:[#allocation2 + $0x1c0] sm:$0xff]
    %v216 = vld [vmem:[#allocation2 + $0x1c8] sm:$0xff]
    %v217 = vld [vmem:[#allocation2 + $0x1d0] sm:$0xff]
    %v218 = vld [vmem:[#allocation2 + $0x1d8] sm:$0xff]
    %v219 = vld [vmem:[#allocation2 + $0x1e0] sm:$0xff]
    %v220 = vld [vmem:[#allocation2 + $0x1e8] sm:$0xff]
    %v221 = vld [vmem:[#allocation2 + $0x1f0] sm:$0xff]
    %v222 = vld [vmem:[#allocation2 + $0x1f8] sm:$0xff]
    %v223 = vld [vmem:[%s5] sm:$0x3]
    %v225 = vlaneseq
    %v226 = vshrl.u32 %v225, 7
    %v227 = vsub.s32 0, %v226
    %v228 = vrot.slane %v223, %v227
    %v229 = vlaneseq
    %v230 = vshrl.u32 %v229, 7
    %v231 = vsub.s32 1, %v230
    %v232 = vrot.slane %v223, %v231
    %235 = vmatprep.subr.mxu0 %v190
    %236 = vmatpush1.msra.mxu0 %v189
    %237 = vmatprep.subr.mxu0 %v188
    %238 = vmatpush1.msra.mxu0 %v187
    %239 = vmatprep.subr.mxu0 %v186
    %240 = vmatpush1.msra.mxu0 %v185
    %241 = vmatprep.subr.mxu0 %v184
    %242 = vmatpush1.msra.mxu0 %v183
    %243 = vmatprep.subr.mxu0 %v182
    %244 = vmatpush1.msra.mxu0 %v181
    %245 = vmatprep.subr.mxu0 %v180
    %246 = vmatpush1.msra.mxu0 %v179
    %247 = vmatprep.subr.mxu0 %v178
    %248 = vmatpush1.msra.mxu0 %v177
    %249 = vmatprep.subr.mxu0 %v176
    %250 = vmatpush1.msra.mxu0 %v175
    %251 = vmatprep.subr.mxu0 %v174
    %252 = vmatpush1.msra.mxu0 %v173
    %253 = vmatprep.subr.mxu0 %v172
    %254 = vmatpush1.msra.mxu0 %v171
    %255 = vmatprep.subr.mxu0 %v170
    %256 = vmatpush1.msra.mxu0 %v169
    %257 = vmatprep.subr.mxu0 %v168
    %258 = vmatpush1.msra.mxu0 %v167
    %259 = vmatprep.subr.mxu0 %v166
    %260 = vmatpush1.msra.mxu0 %v165
    %261 = vmatprep.subr.mxu0 %v164
    %262 = vmatpush1.msra.mxu0 %v163
    %263 = vmatprep.subr.mxu0 %v162
    %264 = vmatpush1.msra.mxu0 %v161
    %265 = vmatprep.subr.mxu0 %v160
    %266 = vmatpush1.msra.mxu0 %v159
    %267 = vmatprep.subr.mxu0 %v222
    %268 = vmatpush2.msra.mxu0 %v221
    %269 = vmatprep.subr.mxu0 %v220
    %270 = vmatpush2.msra.mxu0 %v219
    %271 = vmatprep.subr.mxu0 %v218
    %272 = vmatpush2.msra.mxu0 %v217
    %273 = vmatprep.subr.mxu0 %v216
    %274 = vmatpush2.msra.mxu0 %v215
    %275 = vmatprep.subr.mxu0 %v214
    %276 = vmatpush2.msra.mxu0 %v213
    %277 = vmatprep.subr.mxu0 %v212
    %278 = vmatpush2.msra.mxu0 %v211
    %279 = vmatprep.subr.mxu0 %v210
    %280 = vmatpush2.msra.mxu0 %v209
    %281 = vmatprep.subr.mxu0 %v208
    %282 = vmatpush2.msra.mxu0 %v207
    %283 = vmatprep.subr.mxu0 %v206
    %284 = vmatpush2.msra.mxu0 %v205
    %285 = vmatprep.subr.mxu0 %v204
    %286 = vmatpush2.msra.mxu0 %v203
    %287 = vmatprep.subr.mxu0 %v202
    %288 = vmatpush2.msra.mxu0 %v201
    %289 = vmatprep.subr.mxu0 %v200
    %290 = vmatpush2.msra.mxu0 %v199
    %291 = vmatprep.subr.mxu0 %v198
    %292 = vmatpush2.msra.mxu0 %v197
    %293 = vmatprep.subr.mxu0 %v196
    %294 = vmatpush2.msra.mxu0 %v195
    %295 = vmatprep.subr.mxu0 %v194
    %296 = vmatpush2.msra.mxu0 %v193
    %297 = vmatprep.subr.mxu0 %v192
    %298 = vmatpush2.msra.mxu0 %v191
    %299 = vmatprep.mubr.f32.mxu0 %v156
    %300 = vmatmul.mubr.f32.gmra.mxu0 %v155
    %v301 = vpop.f32.mrf.mxu0
    %v302 = vadd.f32 %v228, %v301
    %v303 = vpop.f32.mrf.mxu0
    %v304 = vadd.f32 %v232, %v303
    %305 = vmatprep.mubr.f32.mxu0 %v158
    %306 = vmatmul.mubr.f32.gmra.mxu0 %v157
    %v307 = vpop.f32.mrf.mxu0
    %v308 = vadd.f32 %v228, %v307
    %v309 = vpop.f32.mrf.mxu0
    %v310 = vadd.f32 %v232, %v309
    %311 = vdwg.mxu0
    %v312 = vmax.f32 %v302, 0.0
    %v313 = vmax.f32 %v304, 0.0
    %v314 = vmax.f32 %v308, 0.0
    %v315 = vmax.f32 %v310, 0.0
    %v316 = vld [vmem:[%s6] sm:$0xff]
    %v317 = vld [vmem:[%s6 + $0x8] sm:$0xff]
    %v318 = vld [vmem:[%s6 + $0x10] sm:$0xff]
    %v319 = vld [vmem:[%s6 + $0x18] sm:$0xff]
    %v320 = vld [vmem:[%s6 + $0x20] sm:$0xff]
    %v321 = vld [vmem:[%s6 + $0x28] sm:$0xff]
    %v322 = vld [vmem:[%s6 + $0x30] sm:$0xff]
    %v323 = vld [vmem:[%s6 + $0x38] sm:$0xff]
    %v324 = vld [vmem:[%s6 + $0x40] sm:$0xff]
    %v325 = vld [vmem:[%s6 + $0x48] sm:$0xff]
    %v326 = vld [vmem:[%s6 + $0x50] sm:$0xff]
    %v327 = vld [vmem:[%s6 + $0x58] sm:$0xff]
    %v328 = vld [vmem:[%s6 + $0x60] sm:$0xff]
    %v329 = vld [vmem:[%s6 + $0x68] sm:$0xff]
    %v330 = vld [vmem:[%s6 + $0x70] sm:$0xff]
    %v331 = vld [vmem:[%s6 + $0x78] sm:$0xff]
    %v332 = vld [vmem:[%s6 + $0x80] sm:$0xff]
    %v333 = vld [vmem:[%s6 + $0x88] sm:$0xff]
    %v334 = vld [vmem:[%s6 + $0x90] sm:$0xff]
    %v335 = vld [vmem:[%s6 + $0x98] sm:$0xff]
    %v336 = vld [vmem:[%s6 + $0xa0] sm:$0xff]
    %v337 = vld [vmem:[%s6 + $0xa8] sm:$0xff]
    %v338 = vld [vmem:[%s6 + $0xb0] sm:$0xff]
    %v339 = vld [vmem:[%s6 + $0xb8] sm:$0xff]
    %v340 = vld [vmem:[%s6 + $0xc0] sm:$0xff]
    %v341 = vld [vmem:[%s6 + $0xc8] sm:$0xff]
    %v342 = vld [vmem:[%s6 + $0xd0] sm:$0xff]
    %v343 = vld [vmem:[%s6 + $0xd8] sm:$0xff]
    %v344 = vld [vmem:[%s6 + $0xe0] sm:$0xff]
    %v345 = vld [vmem:[%s6 + $0xe8] sm:$0xff]
    %v346 = vld [vmem:[%s6 + $0xf0] sm:$0xff]
    %v347 = vld [vmem:[%s6 + $0xf8] sm:$0xff]
    %v348 = vld [vmem:[%s7] sm:$0x1]
    %v350 = vlaneseq
    %v351 = vshrl.u32 %v350, 7
    %v352 = vsub.s32 0, %v351
    %v353 = vrot.slane %v348, %v352
    %355 = vmatprep.subr.mxu0 0.0
    %356 = vmatpush1.msra.mxu0 %v331
    %357 = vmatprep.subr.mxu0 0.0
    %358 = vmatpush1.msra.mxu0 %v330
    %359 = vmatprep.subr.mxu0 0.0
    %360 = vmatpush1.msra.mxu0 %v329
    %361 = vmatprep.subr.mxu0 0.0
    %362 = vmatpush1.msra.mxu0 %v328
    %363 = vmatprep.subr.mxu0 0.0
    %364 = vmatpush1.msra.mxu0 %v327
    %365 = vmatprep.subr.mxu0 0.0
    %366 = vmatpush1.msra.mxu0 %v326
    %367 = vmatprep.subr.mxu0 0.0
    %368 = vmatpush1.msra.mxu0 %v325
    %369 = vmatprep.subr.mxu0 0.0
    %370 = vmatpush1.msra.mxu0 %v324
    %371 = vmatprep.subr.mxu0 0.0
    %372 = vmatpush1.msra.mxu0 %v323
    %373 = vmatprep.subr.mxu0 0.0
    %374 = vmatpush1.msra.mxu0 %v322
    %375 = vmatprep.subr.mxu0 0.0
    %376 = vmatpush1.msra.mxu0 %v321
    %377 = vmatprep.subr.mxu0 0.0
    %378 = vmatpush1.msra.mxu0 %v320
    %379 = vmatprep.subr.mxu0 0.0
    %380 = vmatpush1.msra.mxu0 %v319
    %381 = vmatprep.subr.mxu0 0.0
    %382 = vmatpush1.msra.mxu0 %v318
    %383 = vmatprep.subr.mxu0 0.0
    %384 = vmatpush1.msra.mxu0 %v317
    %385 = vmatprep.subr.mxu0 0.0
    %386 = vmatpush1.msra.mxu0 %v316
    %387 = vmatprep.subr.mxu0 0.0
    %388 = vmatpush2.msra.mxu0 %v347
    %389 = vmatprep.subr.mxu0 0.0
    %390 = vmatpush2.msra.mxu0 %v346
    %391 = vmatprep.subr.mxu0 0.0
    %392 = vmatpush2.msra.mxu0 %v345
    %393 = vmatprep.subr.mxu0 0.0
    %394 = vmatpush2.msra.mxu0 %v344
    %395 = vmatprep.subr.mxu0 0.0
    %396 = vmatpush2.msra.mxu0 %v343
    %397 = vmatprep.subr.mxu0 0.0
    %398 = vmatpush2.msra.mxu0 %v342
    %399 = vmatprep.subr.mxu0 0.0
    %400 = vmatpush2.msra.mxu0 %v341
    %401 = vmatprep.subr.mxu0 0.0
    %402 = vmatpush2.msra.mxu0 %v340
    %403 = vmatprep.subr.mxu0 0.0
    %404 = vmatpush2.msra.mxu0 %v339
    %405 = vmatprep.subr.mxu0 0.0
    %406 = vmatpush2.msra.mxu0 %v338
    %407 = vmatprep.subr.mxu0 0.0
    %408 = vmatpush2.msra.mxu0 %v337
    %409 = vmatprep.subr.mxu0 0.0
    %410 = vmatpush2.msra.mxu0 %v336
    %411 = vmatprep.subr.mxu0 0.0
    %412 = vmatpush2.msra.mxu0 %v335
    %413 = vmatprep.subr.mxu0 0.0
    %414 = vmatpush2.msra.mxu0 %v334
    %415 = vmatprep.subr.mxu0 0.0
    %416 = vmatpush2.msra.mxu0 %v333
    %417 = vmatprep.subr.mxu0 0.0
    %418 = vmatpush2.msra.mxu0 %v332
    %419 = vmatprep.mubr.f32.mxu0 %v313
    %420 = vmatmul.mubr.f32.gmra.mxu0 %v312
    %v421 = vpop.f32.mrf.mxu0
    %v422 = vadd.f32 %v353, %v421
    %v423 = vpop.f32.mrf.mxu0
    %424 = vmatprep.mubr.f32.mxu0 %v315
    %425 = vmatmul.mubr.f32.gmra.mxu0 %v314
    %v426 = vpop.f32.mrf.mxu0
    %v427 = vadd.f32 %v353, %v426
    %v428 = vpop.f32.mrf.mxu0
    %429 = vdwg.mxu0
    %v430 = vadd.f32 %v422, 1e-05
    %v431 = vadd.f32 %v427, 1e-05
    %v432 = vmax.f32 %v430, 0.0
    %v433 = vmax.f32 %v431, 0.0
    %vm434 = vcmp.ne.f32.partialorder %v430, %v430
    %vm435 = vcmp.ne.f32.partialorder %v431, %v431
    %v436 = vadd.f32 %v430, 0.0
    %v437 = vadd.f32 %v431, 0.0
    %v438 = vand.u32 2147483647, %v430
    %v439 = vand.u32 2147483647, %v431
    %v440 = vsub.f32 0.0, %v438
    %v441 = vsub.f32 0.0, %v439
    %v442 = vmul.f32 %v440, 1.442695
    %v443 = vpow.pop %v442
    %v444 = vmul.f32 %v441, 1.442695
    %v445 = vpow.pop %v444
    %v446 = vadd.f32 %v443, 1.0
    %v447 = vlog2.pop %v446
    %v448 = vmul.f32 %v447, 0.6931472
    %v449 = vmul.f32 -0.5, %v443
    %v450 = vadd.f32 %v449, 1.0
    %v451 = vmul.f32 %v450, %v443
    %v452 = vand.u32 2147483647, %v443
    %vm453 = vcmp.lt.f32.partialorder %v452, 0.0004427343
    %v454 = vsel %vm453, %v451, %v448
    %v455 = vadd.f32 %v445, 1.0
    %v456 = vlog2.pop %v455
    %v457 = vmul.f32 %v456, 0.6931472
    %v458 = vmul.f32 -0.5, %v445
    %v459 = vadd.f32 %v458, 1.0
    %v460 = vmul.f32 %v459, %v445
    %v461 = vand.u32 2147483647, %v445
    %vm462 = vcmp.lt.f32.partialorder %v461, 0.0004427343
    %v463 = vsel %vm462, %v460, %v457
    %v464 = vadd.f32 %v432, %v454
    %v465 = vadd.f32 %v433, %v463
    %v466 = vsel %vm434, %v436, %v464
    %v467 = vsel %vm435, %v437, %v465
    %v468 = vadd.f32 %v466, 0.001
    %v469 = vadd.f32 %v467, 0.001
    %v470 = vld [vmem:[%s8] sm:$0xff]
    %v471 = vld [vmem:[%s1] sm:$0xff]
    %v472 = vld [vmem:[%s1 + $0x8] sm:$0xff]
    %474 = vset.pattern.permute.xlu0 0
    %475 = vperm.xlu0 %474, %v471
    %v476 = vpop.permute.xlu0 %475
    %479 = vset.pattern.permute.xlu0 0
    %480 = vperm.xlu0 %479, %v472
    %v481 = vpop.permute.xlu0 %480
    %vm483 = vcmask 64512
    %v485 = vsel %vm483, %v468, 0
    %v488 = vsel %vm483, %v469, 0
    %490 = vmatprep.subr.mxu0 0.0
    %491 = vmatpush1.msra.mxu0 0.0
    %492 = vmatprep.subr.mxu0 0.0
    %493 = vmatpush1.msra.mxu0 0.0
    %494 = vmatprep.subr.mxu0 0.0
    %495 = vmatpush1.msra.mxu0 0.0
    %496 = vmatprep.subr.mxu0 0.0
    %497 = vmatpush1.msra.mxu0 0.0
    %498 = vmatprep.subr.mxu0 0.0
    %499 = vmatpush1.msra.mxu0 0.0
    %500 = vmatprep.subr.mxu0 0.0
    %501 = vmatpush1.msra.mxu0 0.0
    %502 = vmatprep.subr.mxu0 0.0
    %503 = vmatpush1.msra.mxu0 0.0
    %504 = vmatprep.subr.mxu0 0.0
    %505 = vmatpush1.msra.mxu0 0.0
    %506 = vmatprep.subr.mxu0 0.0
    %507 = vmatpush1.msra.mxu0 0.0
    %508 = vmatprep.subr.mxu0 0.0
    %509 = vmatpush1.msra.mxu0 0.0
    %510 = vmatprep.subr.mxu0 0.0
    %511 = vmatpush1.msra.mxu0 0.0
    %512 = vmatprep.subr.mxu0 0.0
    %513 = vmatpush1.msra.mxu0 0.0
    %514 = vmatprep.subr.mxu0 0.0
    %515 = vmatpush1.msra.mxu0 0.0
    %516 = vmatprep.subr.mxu0 0.0
    %517 = vmatpush1.msra.mxu0 0.0
    %518 = vmatprep.subr.mxu0 0.0
    %519 = vmatpush1.msra.mxu0 0.0
    %520 = vmatprep.subr.mxu0 0.0
    %521 = vmatpush1.msra.mxu0 %v470
    %522 = vmatprep.subr.mxu0 0.0
    %523 = vmatpush2.msra.mxu0 0.0
    %524 = vmatprep.subr.mxu0 0.0
    %525 = vmatpush2.msra.mxu0 0.0
    %526 = vmatprep.subr.mxu0 0.0
    %527 = vmatpush2.msra.mxu0 0.0
    %528 = vmatprep.subr.mxu0 0.0
    %529 = vmatpush2.msra.mxu0 0.0
    %530 = vmatprep.subr.mxu0 0.0
    %531 = vmatpush2.msra.mxu0 0.0
    %532 = vmatprep.subr.mxu0 0.0
    %533 = vmatpush2.msra.mxu0 0.0
    %534 = vmatprep.subr.mxu0 0.0
    %535 = vmatpush2.msra.mxu0 0.0
    %536 = vmatprep.subr.mxu0 0.0
    %537 = vmatpush2.msra.mxu0 0.0
    %538 = vmatprep.subr.mxu0 0.0
    %539 = vmatpush2.msra.mxu0 0.0
    %540 = vmatprep.subr.mxu0 0.0
    %541 = vmatpush2.msra.mxu0 0.0
    %542 = vmatprep.subr.mxu0 0.0
    %543 = vmatpush2.msra.mxu0 0.0
    %544 = vmatprep.subr.mxu0 0.0
    %545 = vmatpush2.msra.mxu0 0.0
    %546 = vmatprep.subr.mxu0 0.0
    %547 = vmatpush2.msra.mxu0 0.0
    %548 = vmatprep.subr.mxu0 0.0
    %549 = vmatpush2.msra.mxu0 0.0
    %550 = vmatprep.subr.mxu0 0.0
    %551 = vmatpush2.msra.mxu0 0.0
    %552 = vmatprep.subr.mxu0 0.0
    %553 = vmatpush2.msra.mxu0 0.0
    %554 = vmatprep.mubr.f32.mxu0 0.0
    %555 = vmatmul.mubr.f32.gmra.mxu0 %v485
    %v556 = vpop.f32.mrf.mxu0
    %v557 = vadd.f32 %v476, %v556
    %v558 = vpop.f32.mrf.mxu0
    %559 = vmatprep.mubr.f32.mxu0 0.0
    %560 = vmatmul.mubr.f32.gmra.mxu0 %v488
    %v561 = vpop.f32.mrf.mxu0
    %v562 = vadd.f32 %v481, %v561
    %v563 = vpop.f32.mrf.mxu0
    %564 = vdwg.mxu0
    %vm565 = vcmask 23552
    %566 = vst.msk [vmem:[%s9] sm:$0xff] %vm565, %v557
    %567 = vst.msk [vmem:[%s9 + $0x8] sm:$0xff] %vm565, %v562
    // Predicated region
    $region42: #{tpu_custom_call.1} parent=1 // pred_check
      _
    $region43: #{tpu_custom_call.1} parent=1 // pred_check_branch
      %569 = sbr.rel (0) target = $region45
    $region44: #{tpu_custom_call.1} parent=1 // pred_region
      _
    $region45: #{tpu_custom_call.1} parent=1 // pred_fallthru
      _
    // Predicated region
    $region46: #{tpu_custom_call.1} parent=1 // pred_check
      _
    $region47: #{tpu_custom_call.1} parent=1 // pred_check_branch
      %571 = sbr.rel (0) target = $region49
    $region48: #{tpu_custom_call.1} parent=1 // pred_region
      _
    $region49: #{tpu_custom_call.1} parent=1 // pred_fallthru
      _
    %572 = vsyncpa [#allocation3], 1

</llo_original>
